<compile_context>
chip_gen: v7x
topology: tpu7x:2x2x1
jax: 0.10.0
libtpu: 0.0.40
codegen_flags: <defaults>
</compile_context>

<pallas_src>
import jax
import jax.numpy as jnp
from jax.experimental import pallas as pl
from jax.experimental.pallas import tpu as pltpu

EPS = 1e-5  # PyTorch BatchNorm1d default eps


def _round_up(v, m):
    return ((v + m - 1) // m) * m


def _pad2(a, rows, cols):
    """Zero-pad a 2-D array up to (rows, cols). Preserves dtype."""
    return jnp.pad(a, ((0, rows - a.shape[0]), (0, cols - a.shape[1])))


def _mlp_bn_kernel(x_ref, w1_ref, bn_ref, w2_hbm, w3_hbm, b3_ref, o_ref,
                   w2_buf, w3_buf, sem):
    """Fused fc1 -> bn1 -> relu -> fc2 -> bn2 -> relu -> fc3.

    BatchNorm uses PyTorch *training-mode* semantics (module default): per-feature
    batch mean and biased batch variance over axis 0.  fc1/fc2 biases are omitted
    because they cancel exactly under batch normalization.
    """
    # Kick off w2 / w3 HBM->VMEM loads immediately; they overlap with the fc1 and
    # fc2 matmuls (the gridless block otherwise has zero DMA/compute overlap).
    cp2 = pltpu.make_async_copy(w2_hbm, w2_buf, sem.at[0])
    cp3 = pltpu.make_async_copy(w3_hbm, w3_buf, sem.at[1])
    cp2.start()
    cp3.start()

    x = x_ref[...]                       # f32 activations
    inv_n = 1.0 / x.shape[0]
    bn = bn_ref[...]                     # (4, H): [g1; bt1; g2; bt2], f32

    def bn_relu(h, g, bt):
        hf = h.shape[1]
        # One fused cross-sublane reduction over [h | h*h] instead of two.
        s = jnp.sum(jnp.concatenate([h, h * h], axis=-1), axis=0, keepdims=True)
        mu = s[:, :hf] * inv_n
        ex2 = s[:, hf:] * inv_n
        var = jnp.maximum(ex2 - mu * mu, 0.0)      # guard tiny negative round-off
        # Fold BN into one per-feature affine: 2 VPU ops/elem; rsqrt -> EUP slot.
        scale = g * jax.lax.rsqrt(var + EPS)
        shift = bt - mu * scale
        return jnp.maximum(h * scale + shift, 0.0)

    # fc1 -> bn1 -> relu   (bias dropped: cancels under training-mode BN)
    h = jnp.dot(x.astype(jnp.bfloat16), w1_ref[...],
                preferred_element_type=jnp.float32)
    h = bn_relu(h, bn[0:1, :], bn[1:2, :])

    # fc2 -> bn2 -> relu
    cp2.wait()
    h = jnp.dot(h.astype(jnp.bfloat16), w2_buf[...],
                preferred_element_type=jnp.float32)
    h = bn_relu(h, bn[2:3, :], bn[3:4, :])

    # fc3 (+ bias)
    cp3.wait()
    y = jnp.dot(h.astype(jnp.bfloat16), w3_buf[...],
                preferred_element_type=jnp.float32)
    o_ref[...] = (y + b3_ref[...]).astype(o_ref.dtype)


def nn_batchnorm_forward(x, params):
    (w1, b1, g1, bt1, w2, b2, g2, bt2, w3, b3) = params
    del b1, b2  # mathematically cancelled by training-mode BN; never sent to TPU

    n, in_size = x.shape
    hidden = w1.shape[1]
    out_size = w3.shape[1]

    # Lane-dense (128-aligned) shapes for the kernel.
    ip = _round_up(in_size, 128)
    hp = _round_up(hidden, 128)
    op = _round_up(out_size, 128)

    # NOTE: weight padding + bf16 storage is one-time parameter prep in a real
    # deployment; done here per-call only to keep the script self-contained.
    x_p = _pad2(x.astype(jnp.float32), n, ip)
    w1_p = _pad2(w1.astype(jnp.bfloat16), ip, hp)
    w2_p = _pad2(w2.astype(jnp.bfloat16), hp, hp)
    w3_p = _pad2(w3.astype(jnp.bfloat16), hp, op)
    bn_p = jnp.concatenate(
        [_pad2(g1, 1, hp), _pad2(bt1, 1, hp), _pad2(g2, 1, hp), _pad2(bt2, 1, hp)],
        axis=0).astype(jnp.float32)                     # (4, hp), f32
    b3_p = _pad2(b3.astype(jnp.float32), 1, op)

    out_p = pl.pallas_call(
        _mlp_bn_kernel,
        out_shape=jax.ShapeDtypeStruct((n, op), jnp.float32),
        # Single block, no grid: everything fits in VMEM with large margin at
        # these shapes (see TODO above for the gridded version at scale).
        in_specs=[
            pl.BlockSpec(memory_space=pltpu.MemorySpace.VMEM),  # x
            pl.BlockSpec(memory_space=pltpu.MemorySpace.VMEM),  # w1
            pl.BlockSpec(memory_space=pltpu.MemorySpace.VMEM),  # packed bn params
            pl.BlockSpec(memory_space=pl.ANY),                  # w2 (manual DMA)
            pl.BlockSpec(memory_space=pl.ANY),                  # w3 (manual DMA)
            pl.BlockSpec(memory_space=pltpu.MemorySpace.VMEM),  # b3
        ],
        out_specs=pl.BlockSpec(memory_space=pltpu.MemorySpace.VMEM),
        scratch_shapes=[
            pltpu.VMEM((hp, hp), jnp.bfloat16),     # w2 landing buffer
            pltpu.VMEM((hp, op), jnp.bfloat16),     # w3 landing buffer
            pltpu.SemaphoreType.DMA((2,)),
        ],
        # Explicit scoped-VMEM limit: keeps the gridless design compiling on
        # v5e (16 MiB default) at shapes that already fit on v6e/v7x (32 MiB).
        compiler_params=pltpu.CompilerParams(vmem_limit_bytes=32 * 1024 * 1024),
    )(x_p, w1_p, bn_p, w2_p, w3_p, b3_p)

    return out_p[:, :out_size]


def init_params(key, input_size, hidden_size, output_size):
    """Deterministic init mimicking nn.Linear (uniform +-1/sqrt(fan_in)) and
    nn.BatchNorm1d (gamma=1, beta=0). Weights stored as [in, out], matmul weights
    kept in bf16 (their HBM storage format for the kernel)."""
    ks = jax.random.split(key, 6)

    def linear(kw, kb, fan_in, fan_out):
        bound = 1.0 / jnp.sqrt(fan_in)
        w = jax.random.uniform(kw, (fan_in, fan_out), jnp.float32, -bound, bound)
        b = jax.random.uniform(kb, (1, fan_out), jnp.float32, -bound, bound)
        return w.astype(jnp.bfloat16), b

    w1, b1 = linear(ks[0], ks[1], input_size, hidden_size)
    w2, b2 = linear(ks[2], ks[3], hidden_size, hidden_size)
    w3, b3 = linear(ks[4], ks[5], hidden_size, output_size)
    g1 = jnp.ones((1, hidden_size), jnp.float32)
    bt1 = jnp.zeros((1, hidden_size), jnp.float32)
    g2 = jnp.ones((1, hidden_size), jnp.float32)
    bt2 = jnp.zeros((1, hidden_size), jnp.float32)
    return (w1, b1, g1, bt1, w2, b2, g2, bt2, w3, b3)


def reference_forward(x, params):
    """Faithful f32 translation of the PyTorch forward (fc biases included,
    training-mode BN) using the same (bf16-stored) weight values upcast to f32.
    Proves the bias-dropping / BN-folding optimizations are exact; the remaining
    difference vs. the kernel is the intentional bf16 precision of the MXU
    operands."""
    (w1, b1, g1, bt1, w2, b2, g2, bt2, w3, b3) = params
    w1, w2, w3 = (w.astype(jnp.float32) for w in (w1, w2, w3))

    def bn(h, g, bt):
        mu = jnp.mean(h, axis=0, keepdims=True)
        var = jnp.mean((h - mu) ** 2, axis=0, keepdims=True)  # biased (training mode)
        return (h - mu) / jnp.sqrt(var + EPS) * g + bt

    h = jnp.maximum(bn(x @ w1 + b1, g1, bt1), 0.0)
    h = jnp.maximum(bn(h @ w2 + b2, g2, bt2), 0.0)
    return h @ w3 + b3


if __name__ == "__main__":
    batch, input_size, hidden_size, output_size = 8, 16, 32, 8

    key = jax.random.PRNGKey(0)
    kx, kp = jax.random.split(key)
    x = jax.random.normal(kx, (batch, input_size), jnp.float32)
    params = init_params(kp, input_size, hidden_size, output_size)

    out = jax.block_until_ready(nn_batchnorm_forward(x, params))

    ref = reference_forward(x, params)
    assert out.shape == (batch, output_size)
    # Looser tolerance accounts only for the intentional bf16 rounding of the
    # matmul operands (accumulation and BN math are f32); measured error is ~1e-2.
    assert jnp.allclose(out, ref, atol=5e-2, rtol=5e-2), "mismatch vs reference"

    print("KERNEL_OK")
</pallas_src>

<mosaic_0001>
module attributes {stable_mosaic.version = 11 : i64} {
  func.func @_mlp_bn_kernel(%arg0: memref<8x128xf32, #tpu.memory_space<vmem>>, %arg1: memref<128x128xbf16, #tpu.memory_space<vmem>>, %arg2: memref<4x128xf32, #tpu.memory_space<vmem>>, %arg3: memref<128x128xbf16, #tpu.memory_space<any>>, %arg4: memref<128x128xbf16, #tpu.memory_space<any>>, %arg5: memref<1x128xf32, #tpu.memory_space<vmem>>, %arg6: memref<8x128xf32, #tpu.memory_space<vmem>>, %arg7: memref<128x128xbf16, #tpu.memory_space<vmem>>, %arg8: memref<128x128xbf16, #tpu.memory_space<vmem>>, %arg9: memref<2x!tpu.dma_semaphore, #tpu.memory_space<semaphore_mem>>) attributes {dimension_semantics = [], scalar_prefetch = 0 : i64, scratch_operands = 3 : i64, tpu.core_type = #tpu.core_type<tc>} {
    %c0_i32 = arith.constant 0 : i32
    %0 = tpu.memref_slice %arg9[%c0_i32] : memref<2x!tpu.dma_semaphore, #tpu.memory_space<semaphore_mem>> -> memref<1x!tpu.dma_semaphore, #tpu.memory_space<semaphore_mem>>
    %1 = tpu.memref_squeeze %0 : memref<1x!tpu.dma_semaphore, #tpu.memory_space<semaphore_mem>> -> memref<!tpu.dma_semaphore, #tpu.memory_space<semaphore_mem>>
    tpu.enqueue_dma source(%arg3 : memref<128x128xbf16, #tpu.memory_space<any>>) target(%arg7 : memref<128x128xbf16, #tpu.memory_space<vmem>>) target_semaphore(%1 : memref<!tpu.dma_semaphore, #tpu.memory_space<semaphore_mem>>)
    %c1_i32 = arith.constant 1 : i32
    %2 = tpu.memref_slice %arg9[%c1_i32] : memref<2x!tpu.dma_semaphore, #tpu.memory_space<semaphore_mem>> -> memref<1x!tpu.dma_semaphore, #tpu.memory_space<semaphore_mem>>
    %3 = tpu.memref_squeeze %2 : memref<1x!tpu.dma_semaphore, #tpu.memory_space<semaphore_mem>> -> memref<!tpu.dma_semaphore, #tpu.memory_space<semaphore_mem>>
    tpu.enqueue_dma source(%arg4 : memref<128x128xbf16, #tpu.memory_space<any>>) target(%arg8 : memref<128x128xbf16, #tpu.memory_space<vmem>>) target_semaphore(%3 : memref<!tpu.dma_semaphore, #tpu.memory_space<semaphore_mem>>)
    %c0 = arith.constant 0 : index
    %c0_0 = arith.constant 0 : index
    %4 = vector.load %arg0[%c0, %c0_0] : memref<8x128xf32, #tpu.memory_space<vmem>>, vector<8x128xf32>
    %c0_1 = arith.constant 0 : index
    %c0_2 = arith.constant 0 : index
    %5 = vector.load %arg2[%c0_1, %c0_2] : memref<4x128xf32, #tpu.memory_space<vmem>>, vector<4x128xf32>
    %6 = arith.truncf %4 : vector<8x128xf32> to vector<8x128xbf16>
    %c0_3 = arith.constant 0 : index
    %c0_4 = arith.constant 0 : index
    %7 = vector.load %arg1[%c0_3, %c0_4] : memref<128x128xbf16, #tpu.memory_space<vmem>>, vector<128x128xbf16>
    %cst = arith.constant dense<0.000000e+00> : vector<8x128xf32>
    %8 = tpu.matmul %6, %7, %cst {dimension_numbers = #tpu.dot_dimension_numbers<[1], [0], [0], [1], [0, 0, 1, 1], [], []>} : vector<8x128xbf16>, vector<128x128xbf16>, vector<8x128xf32> -> vector<8x128xf32>
    %9 = vector.extract_strided_slice %5 {offsets = [0, 0], sizes = [1, 128], strides = [1, 1]} : vector<4x128xf32> to vector<1x128xf32>
    %10 = vector.extract_strided_slice %5 {offsets = [1, 0], sizes = [1, 128], strides = [1, 1]} : vector<4x128xf32> to vector<1x128xf32>
    %11 = arith.mulf %8, %8 : vector<8x128xf32>
    %12 = tpu.concatenate %8, %11 in 1 : vector<8x128xf32>, vector<8x128xf32> -> vector<8x256xf32>
    %cst_5 = arith.constant dense<0.000000e+00> : vector<256xf32>
    %13 = vector.multi_reduction <add>, %12, %cst_5 [0] : vector<8x256xf32> to vector<256xf32>
    %14 = vector.shape_cast %13 : vector<256xf32> to vector<1x256xf32>
    %15 = vector.extract_strided_slice %14 {offsets = [0, 0], sizes = [1, 128], strides = [1, 1]} : vector<1x256xf32> to vector<1x128xf32>
    %cst_6 = arith.constant 1.250000e-01 : f32
    %16 = vector.broadcast %cst_6 : f32 to vector<1x128xf32>
    %17 = arith.mulf %15, %16 : vector<1x128xf32>
    %18 = vector.extract_strided_slice %14 {offsets = [0, 128], sizes = [1, 128], strides = [1, 1]} : vector<1x256xf32> to vector<1x128xf32>
    %cst_7 = arith.constant 1.250000e-01 : f32
    %19 = vector.broadcast %cst_7 : f32 to vector<1x128xf32>
    %20 = arith.mulf %18, %19 : vector<1x128xf32>
    %21 = arith.mulf %17, %17 : vector<1x128xf32>
    %22 = arith.subf %20, %21 : vector<1x128xf32>
    %cst_8 = arith.constant 0.000000e+00 : f32
    %23 = vector.broadcast %cst_8 : f32 to vector<1x128xf32>
    %24 = arith.maximumf %22, %23 : vector<1x128xf32>
    %cst_9 = arith.constant 9.99999974E-6 : f32
    %25 = vector.broadcast %cst_9 : f32 to vector<1x128xf32>
    %26 = arith.addf %24, %25 : vector<1x128xf32>
    %27 = math.rsqrt %26 : vector<1x128xf32>
    %28 = arith.mulf %9, %27 : vector<1x128xf32>
    %29 = arith.mulf %17, %28 : vector<1x128xf32>
    %30 = arith.subf %10, %29 : vector<1x128xf32>
    %31 = vector.broadcast %28 : vector<1x128xf32> to vector<8x128xf32>
    %32 = arith.mulf %8, %31 : vector<8x128xf32>
    %33 = vector.broadcast %30 : vector<1x128xf32> to vector<8x128xf32>
    %34 = arith.addf %32, %33 : vector<8x128xf32>
    %cst_10 = arith.constant 0.000000e+00 : f32
    %35 = vector.broadcast %cst_10 : f32 to vector<8x128xf32>
    %36 = arith.maximumf %34, %35 : vector<8x128xf32>
    %c0_i32_11 = arith.constant 0 : i32
    %37 = tpu.memref_slice %arg9[%c0_i32_11] : memref<2x!tpu.dma_semaphore, #tpu.memory_space<semaphore_mem>> -> memref<1x!tpu.dma_semaphore, #tpu.memory_space<semaphore_mem>>
    %38 = tpu.memref_squeeze %37 : memref<1x!tpu.dma_semaphore, #tpu.memory_space<semaphore_mem>> -> memref<!tpu.dma_semaphore, #tpu.memory_space<semaphore_mem>>
    tpu.wait_dma2 semaphore(%38 : memref<!tpu.dma_semaphore, #tpu.memory_space<semaphore_mem>>) src(%arg3 : memref<128x128xbf16, #tpu.memory_space<any>>) dst(%arg7 : memref<128x128xbf16, #tpu.memory_space<vmem>>)
    %39 = arith.truncf %36 : vector<8x128xf32> to vector<8x128xbf16>
    %c0_12 = arith.constant 0 : index
    %c0_13 = arith.constant 0 : index
    %40 = vector.load %arg7[%c0_12, %c0_13] : memref<128x128xbf16, #tpu.memory_space<vmem>>, vector<128x128xbf16>
    %cst_14 = arith.constant dense<0.000000e+00> : vector<8x128xf32>
    %41 = tpu.matmul %39, %40, %cst_14 {dimension_numbers = #tpu.dot_dimension_numbers<[1], [0], [0], [1], [0, 0, 1, 1], [], []>} : vector<8x128xbf16>, vector<128x128xbf16>, vector<8x128xf32> -> vector<8x128xf32>
    %42 = vector.extract_strided_slice %5 {offsets = [2, 0], sizes = [1, 128], strides = [1, 1]} : vector<4x128xf32> to vector<1x128xf32>
    %43 = vector.extract_strided_slice %5 {offsets = [3, 0], sizes = [1, 128], strides = [1, 1]} : vector<4x128xf32> to vector<1x128xf32>
    %44 = arith.mulf %41, %41 : vector<8x128xf32>
    %45 = tpu.concatenate %41, %44 in 1 : vector<8x128xf32>, vector<8x128xf32> -> vector<8x256xf32>
    %cst_15 = arith.constant dense<0.000000e+00> : vector<256xf32>
    %46 = vector.multi_reduction <add>, %45, %cst_15 [0] : vector<8x256xf32> to vector<256xf32>
    %47 = vector.shape_cast %46 : vector<256xf32> to vector<1x256xf32>
    %48 = vector.extract_strided_slice %47 {offsets = [0, 0], sizes = [1, 128], strides = [1, 1]} : vector<1x256xf32> to vector<1x128xf32>
    %cst_16 = arith.constant 1.250000e-01 : f32
    %49 = vector.broadcast %cst_16 : f32 to vector<1x128xf32>
    %50 = arith.mulf %48, %49 : vector<1x128xf32>
    %51 = vector.extract_strided_slice %47 {offsets = [0, 128], sizes = [1, 128], strides = [1, 1]} : vector<1x256xf32> to vector<1x128xf32>
    %cst_17 = arith.constant 1.250000e-01 : f32
    %52 = vector.broadcast %cst_17 : f32 to vector<1x128xf32>
    %53 = arith.mulf %51, %52 : vector<1x128xf32>
    %54 = arith.mulf %50, %50 : vector<1x128xf32>
    %55 = arith.subf %53, %54 : vector<1x128xf32>
    %cst_18 = arith.constant 0.000000e+00 : f32
    %56 = vector.broadcast %cst_18 : f32 to vector<1x128xf32>
    %57 = arith.maximumf %55, %56 : vector<1x128xf32>
    %cst_19 = arith.constant 9.99999974E-6 : f32
    %58 = vector.broadcast %cst_19 : f32 to vector<1x128xf32>
    %59 = arith.addf %57, %58 : vector<1x128xf32>
    %60 = math.rsqrt %59 : vector<1x128xf32>
    %61 = arith.mulf %42, %60 : vector<1x128xf32>
    %62 = arith.mulf %50, %61 : vector<1x128xf32>
    %63 = arith.subf %43, %62 : vector<1x128xf32>
    %64 = vector.broadcast %61 : vector<1x128xf32> to vector<8x128xf32>
    %65 = arith.mulf %41, %64 : vector<8x128xf32>
    %66 = vector.broadcast %63 : vector<1x128xf32> to vector<8x128xf32>
    %67 = arith.addf %65, %66 : vector<8x128xf32>
    %cst_20 = arith.constant 0.000000e+00 : f32
    %68 = vector.broadcast %cst_20 : f32 to vector<8x128xf32>
    %69 = arith.maximumf %67, %68 : vector<8x128xf32>
    %c1_i32_21 = arith.constant 1 : i32
    %70 = tpu.memref_slice %arg9[%c1_i32_21] : memref<2x!tpu.dma_semaphore, #tpu.memory_space<semaphore_mem>> -> memref<1x!tpu.dma_semaphore, #tpu.memory_space<semaphore_mem>>
    %71 = tpu.memref_squeeze %70 : memref<1x!tpu.dma_semaphore, #tpu.memory_space<semaphore_mem>> -> memref<!tpu.dma_semaphore, #tpu.memory_space<semaphore_mem>>
    tpu.wait_dma2 semaphore(%71 : memref<!tpu.dma_semaphore, #tpu.memory_space<semaphore_mem>>) src(%arg4 : memref<128x128xbf16, #tpu.memory_space<any>>) dst(%arg8 : memref<128x128xbf16, #tpu.memory_space<vmem>>)
    %72 = arith.truncf %69 : vector<8x128xf32> to vector<8x128xbf16>
    %c0_22 = arith.constant 0 : index
    %c0_23 = arith.constant 0 : index
    %73 = vector.load %arg8[%c0_22, %c0_23] : memref<128x128xbf16, #tpu.memory_space<vmem>>, vector<128x128xbf16>
    %cst_24 = arith.constant dense<0.000000e+00> : vector<8x128xf32>
    %74 = tpu.matmul %72, %73, %cst_24 {dimension_numbers = #tpu.dot_dimension_numbers<[1], [0], [0], [1], [0, 0, 1, 1], [], []>} : vector<8x128xbf16>, vector<128x128xbf16>, vector<8x128xf32> -> vector<8x128xf32>
    %c0_25 = arith.constant 0 : index
    %c0_26 = arith.constant 0 : index
    %75 = vector.load %arg5[%c0_25, %c0_26] : memref<1x128xf32, #tpu.memory_space<vmem>>, vector<1x128xf32>
    %76 = vector.broadcast %75 : vector<1x128xf32> to vector<8x128xf32>
    %77 = arith.addf %74, %76 : vector<8x128xf32>
    %c0_27 = arith.constant 0 : index
    %c0_28 = arith.constant 0 : index
    %78 = vector.load %arg6[%c0_27, %c0_28] : memref<8x128xf32, #tpu.memory_space<vmem>>, vector<8x128xf32>
    tpu.vector_store %arg6[%c0_27, %c0_28], %77 {strides = array<i32>} : memref<8x128xf32, #tpu.memory_space<vmem>>, vector<8x128xf32>,
    return
  }
}

</mosaic_0001>

<llo_original>
// kernel: tpu_custom_call.1
$region0: #{tpu_custom_call.1}
  #allocation0 [shape = 'u32[]', space=smem, size = 0x4, offset = 0x4, fixed_abs, tag = 'smem constant byte address 0x4 - core index']
  #allocation1 [shape = 'u32[144,128]{1,0:T(1,128)}', space=vmem, size = 0x12000, scoped, tag = 'internal scratch']
  #allocation2 [shape = 'bf16[128,128]{1,0:T(16,128)(2,1)}', space=vmem, size = 0x8000, scoped, tag = 'scratch operand']
  #allocation3 [shape = 'bf16[128,128]{1,0:T(16,128)(2,1)}', space=vmem, size = 0x8000, scoped, tag = 'scratch operand']
  #allocation4 [shape = 's32[2]{0}', space=sflag, size = 0x8, scoped, tag = 'scratch operand']
  #allocation11 [shape = 's32[]', space=sflag, size = 0x4, offset = 0, fixed_abs, tag = 'sflag constant byte address 0x0 - dummy sync flag']
  #allocation12 [shape = 's32[]', space=sflag, size = 0x4, offset = 0, fixed_abs, tag = 'sflag constant byte address 0x0 - dummy sync flag']
  #allocation13 [shape = 'u32[]', space=smem, size = 0x4, offset = 0x44, fixed_abs, tag = 'smem constant byte address 0x44 - assertion arg 0']
  #allocation14 [shape = 'u32[]', space=smem, size = 0x4, offset = 0x48, fixed_abs, tag = 'smem constant byte address 0x48 - assertion arg 1']
  #allocation15 [shape = 's32[]', space=sflag, size = 0x4, offset = 0, fixed_abs, tag = 'sflag constant byte address 0x0 - dummy sync flag']
  #allocation16 [shape = 's32[]', space=sflag, size = 0x4, offset = 0, fixed_abs, tag = 'sflag constant byte address 0x0 - dummy sync flag']
  %s0 = inlined_call_operand.hbm [shape: f32[8,128], index: 0, kind: input, shape index: {}]
  %s1 = inlined_call_operand.hbm [shape: bf16[128,128], index: 1, kind: input, shape index: {}]
  %s2 = inlined_call_operand.vmem [shape: f32[4,128], index: 2, kind: input, shape index: {}]
  %s3 = inlined_call_operand.hbm [shape: bf16[128,128], index: 3, kind: input, shape index: {}]
  %s4 = inlined_call_operand.hbm [shape: bf16[128,128], index: 4, kind: input, shape index: {}]
  %s5 = inlined_call_operand.vmem [shape: f32[1,128], index: 5, kind: input, shape index: {}]
  %s6 = inlined_call_operand.hbm [shape: f32[8,128], index: 6, kind: output, shape index: {}]
  %s7 = sld [smem:[#allocation0]]
  $region42: #{tpu_custom_call.1} parent=0
    _
  %s9 = ssub.s32 1, %s7
  %s10 = scalar_select 0, %s9, %s7
  $region1: #{tpu_custom_call.1} parent=0
    #allocation5 [shape = 'u8[4096]{0}', space=vmem, size = 0x1000, scoped, tag = 'input window, operand 0, single buffered']
    #allocation6 [shape = 's32[1]{0}', space=sflag, size = 0x4, scoped, tag = 'scoped memory for tpu_custom_call.1']
    #allocation7 [shape = 's32[1]{0}', space=sflag, size = 0x4, scoped, tag = 'scoped memory for tpu_custom_call.1']
    #allocation8 [shape = 'u8[32768]{0}', space=vmem, size = 0x8000, scoped, tag = 'input window, operand 1, single buffered']
    #allocation9 [shape = 's32[1]{0}', space=sflag, size = 0x4, scoped, tag = 'scoped memory for tpu_custom_call.1']
    #allocation10 [shape = 'u8[4096]{0}', space=vmem, size = 0x1000, scoped, tag = 'output window, operand 0, single buffered']
    %11 = vsyncpa [#allocation6], 0
    %12 = vsyncpa [#allocation9], 0
    %13 = vsyncpa [#allocation7], 0
    // Predicated region
    $region2: #{tpu_custom_call.1} parent=1 // pred_check
      _
    $region3: #{tpu_custom_call.1} parent=1 // pred_check_branch
      %15 = sbr.rel (0) target = $region5
    $region4: #{tpu_custom_call.1} parent=1 // pred_region
      %s17 = ssub.s32 128, 128
      %18 = vsyncadd [#allocation6], %s17
      %s20 = sshll.u32 [#allocation5], 4
      %s21 = int_to_ptr.vmem [resolvable:$true] %s20
      %23 = dma.hbm_to_vmem [thread:$0]  %s0, 128, %s21, [#allocation6]
    $region5: #{tpu_custom_call.1} parent=1 // pred_fallthru
      _
    // Predicated region
    $region6: #{tpu_custom_call.1} parent=1 // pred_check
      _
    $region7: #{tpu_custom_call.1} parent=1 // pred_check_branch
      %25 = sbr.rel (0) target = $region9
    $region8: #{tpu_custom_call.1} parent=1 // pred_region
      %s27 = ssub.s32 1024, 1024
      %28 = vsyncadd [#allocation9], %s27
      %s29 = sshll.u32 [#allocation8], 4
      %s30 = int_to_ptr.vmem [resolvable:$true] %s29
      %35 = dma.hbm_to_vmem [thread:$0]  %s1, 1024, %s30, [#allocation9], 64, 64, 4
    $region9: #{tpu_custom_call.1} parent=1 // pred_fallthru
      _
    // Predicated region
    $region10: #{tpu_custom_call.1} parent=1 // pred_check
      _
    $region11: #{tpu_custom_call.1} parent=1 // pred_check_branch
      %37 = sbr.rel (0) target = $region13
    $region12: #{tpu_custom_call.1} parent=1 // pred_region
      _
    $region13: #{tpu_custom_call.1} parent=1 // pred_fallthru
      _
    // Predicated region
    $region14: #{tpu_custom_call.1} parent=1 // pred_check
      _
    $region15: #{tpu_custom_call.1} parent=1 // pred_check_branch
      %39 = sbr.rel (0) target = $region17
    $region16: #{tpu_custom_call.1} parent=1 // pred_region
      _
    $region17: #{tpu_custom_call.1} parent=1 // pred_fallthru
      _
    // Predicated region
    $region18: #{tpu_custom_call.1} parent=1 // pred_check
      _
    $region19: #{tpu_custom_call.1} parent=1 // pred_check_branch
      %41 = sbr.rel (0) target = $region21
    $region20: #{tpu_custom_call.1} parent=1 // pred_region
      %42 = dma.done [#allocation6], 128
    $region21: #{tpu_custom_call.1} parent=1 // pred_fallthru
      _
    // Predicated region
    $region22: #{tpu_custom_call.1} parent=1 // pred_check
      _
    $region23: #{tpu_custom_call.1} parent=1 // pred_check_branch
      %44 = sbr.rel (0) target = $region25
    $region24: #{tpu_custom_call.1} parent=1 // pred_region
      %45 = dma.done [#allocation9], 1024
    $region25: #{tpu_custom_call.1} parent=1 // pred_fallthru
      _
    // Predicated region
    $region26: #{tpu_custom_call.1} parent=1 // pred_check
      _
    $region27: #{tpu_custom_call.1} parent=1 // pred_check_branch
      %48 = sbr.rel target = $region29
    $region28: #{tpu_custom_call.1} parent=1 // pred_region
      %49 = sst [smem:[#allocation13]] [#allocation12]
      %50 = sst [smem:[#allocation14]] [#allocation11]
    $region29: #{tpu_custom_call.1} parent=1 // pred_fallthru
      _
    %52 = shalt.err (0)
    %s54 = sshll.u32 [#allocation2], 4
    %s55 = int_to_ptr.vmem [resolvable:$true] %s54
    %57 = dma.hbm_to_vmem [thread:$0]  %s3, 1024, %s55, [#allocation4]
    %s58 = scalar_lea.sflag [#allocation4], 1
    // Predicated region
    $region30: #{tpu_custom_call.1} parent=1 // pred_check
      _
    $region31: #{tpu_custom_call.1} parent=1 // pred_check_branch
      %60 = sbr.rel target = $region33
    $region32: #{tpu_custom_call.1} parent=1 // pred_region
      %61 = sst [smem:[#allocation13]] [#allocation16]
      %62 = sst [smem:[#allocation14]] [#allocation15]
    $region33: #{tpu_custom_call.1} parent=1 // pred_fallthru
      _
    %64 = shalt.err (0)
    %s66 = sshll.u32 [#allocation3], 4
    %s67 = int_to_ptr.vmem [resolvable:$true] %s66
    %69 = dma.hbm_to_vmem [thread:$0]  %s4, 1024, %s67, %s58
    %v70 = vld [vmem:[#allocation5] sm:$0xff]
    %v71 = vld [vmem:[%s2] sm:$0xf]
    %v72 = vpack.c.bf16 %v70, %v70
    %v73 = vld [vmem:[#allocation8] sm:$0xf]
    %v74 = vld [vmem:[#allocation8 + $0x4] sm:$0xf]
    %v75 = vld [vmem:[#allocation8 + $0x8] sm:$0xf]
    %v76 = vld [vmem:[#allocation8 + $0xc] sm:$0xf]
    %v77 = vld [vmem:[#allocation8 + $0x10] sm:$0xf]
    %v78 = vld [vmem:[#allocation8 + $0x14] sm:$0xf]
    %v79 = vld [vmem:[#allocation8 + $0x18] sm:$0xf]
    %v80 = vld [vmem:[#allocation8 + $0x1c] sm:$0xf]
    %v81 = vld [vmem:[#allocation8 + $0x20] sm:$0xf]
    %v82 = vld [vmem:[#allocation8 + $0x24] sm:$0xf]
    %v83 = vld [vmem:[#allocation8 + $0x28] sm:$0xf]
    %v84 = vld [vmem:[#allocation8 + $0x2c] sm:$0xf]
    %v85 = vld [vmem:[#allocation8 + $0x30] sm:$0xf]
    %v86 = vld [vmem:[#allocation8 + $0x34] sm:$0xf]
    %v87 = vld [vmem:[#allocation8 + $0x38] sm:$0xf]
    %v88 = vld [vmem:[#allocation8 + $0x3c] sm:$0xf]
    %v105 = vunpack.c.l.b16 %v73
    %v106 = vunpack.c.l.b16 %v74
    %v107 = vunpack.c.l.b16 %v75
    %v108 = vunpack.c.l.b16 %v76
    %v109 = vunpack.c.l.b16 %v77
    %v110 = vunpack.c.l.b16 %v78
    %v111 = vunpack.c.l.b16 %v79
    %v112 = vunpack.c.l.b16 %v80
    %v113 = vunpack.c.l.b16 %v81
    %v114 = vunpack.c.l.b16 %v82
    %v115 = vunpack.c.l.b16 %v83
    %v116 = vunpack.c.l.b16 %v84
    %v117 = vunpack.c.l.b16 %v85
    %v118 = vunpack.c.l.b16 %v86
    %v119 = vunpack.c.l.b16 %v87
    %v120 = vunpack.c.l.b16 %v88
    %v121 = vpack.c.b16 %v106, %v105
    %v122 = vpack.c.b16 %v108, %v107
    %v123 = vpack.c.b16 %v110, %v109
    %v124 = vpack.c.b16 %v112, %v111
    %v125 = vpack.c.b16 %v114, %v113
    %v126 = vpack.c.b16 %v116, %v115
    %v127 = vpack.c.b16 %v118, %v117
    %v128 = vpack.c.b16 %v120, %v119
    %137 = vmatprep.subr.bf16.mxu0 0
    %138 = vmatpush1.bf16.msra.mxu0 %v121
    %139 = vmatprep.subr.bf16.mxu0 0
    %140 = vmatpush1.bf16.msra.mxu0 %v122
    %141 = vmatprep.subr.bf16.mxu0 0
    %142 = vmatpush1.bf16.msra.mxu0 %v123
    %143 = vmatprep.subr.bf16.mxu0 0
    %144 = vmatpush1.bf16.msra.mxu0 %v124
    %145 = vmatprep.subr.bf16.mxu0 0
    %146 = vmatpush1.bf16.msra.mxu0 %v125
    %147 = vmatprep.subr.bf16.mxu0 0
    %148 = vmatpush1.bf16.msra.mxu0 %v126
    %149 = vmatprep.subr.bf16.mxu0 0
    %150 = vmatpush1.bf16.msra.mxu0 %v127
    %151 = vmatprep.subr.bf16.mxu0 0
    %152 = vmatpush1.bf16.msra.mxu0 %v128
    %153 = vmatprep.subr.bf16.mxu0 0
    %154 = vmatpush1.bf16.msra.mxu0 0
    %155 = vmatprep.subr.bf16.mxu0 0
    %156 = vmatpush1.bf16.msra.mxu0 0
    %157 = vmatprep.subr.bf16.mxu0 0
    %158 = vmatpush1.bf16.msra.mxu0 0
    %159 = vmatprep.subr.bf16.mxu0 0
    %160 = vmatpush1.bf16.msra.mxu0 0
    %161 = vmatprep.subr.bf16.mxu0 0
    %162 = vmatpush1.bf16.msra.mxu0 0
    %163 = vmatprep.subr.bf16.mxu0 0
    %164 = vmatpush1.bf16.msra.mxu0 0
    %165 = vmatprep.subr.bf16.mxu0 0
    %166 = vmatpush1.bf16.msra.mxu0 0
    %167 = vmatprep.subr.bf16.mxu0 0
    %168 = vmatpush1.bf16.msra.mxu0 0
    %169 = vmatprep.mubr.bf16.mxu0 0
    %170 = vmatmul.mubr.bf16.gmra.mrb[0].mxu0 %v72
    %v171 = vpop.f32.mrb[0].mxu0
    %v172 = vadd.f32 0.0, %v171
    %v173 = vpop.f32.mrb[0].mxu0
    %v174 = vpop.f32.mrb[0].mxu0
    %v175 = vpop.f32.mrb[0].mxu0
    %176 = vdwg.mxu0
    %v177 = vmul.f32 %v172, %v172
    %v178 = vrot.slane %v172, 4
    %v179 = vadd.f32 %v172, %v178
    %v180 = vrot.slane %v179, 2
    %v181 = vadd.f32 %v179, %v180
    %v182 = vrot.slane %v181, 1
    %v183 = vadd.f32 %v181, %v182
    %v184 = vrot.slane %v177, 4
    %v185 = vadd.f32 %v177, %v184
    %v186 = vrot.slane %v185, 2
    %v187 = vadd.f32 %v185, %v186
    %v188 = vrot.slane %v187, 1
    %v189 = vadd.f32 %v187, %v188
    %v190 = vmul.f32 %v183, 0.125
    %v191 = vmul.f32 %v189, 0.125
    %v192 = vmul.f32 %v190, %v190
    %v193 = vsub.f32 %v191, %v192
    %v194 = vmax.f32 %v193, 0.0
    %v195 = vadd.f32 %v194, 1e-05
    %v196 = vrsqrt.pop %v195
    %v197 = vmul.f32 %v71, %v196
    %v198 = vmul.f32 %v190, %v197
    %v200 = vrot.slane %v198, 7
    %v202 = vsub.f32 %v71, %v200
    %v203 = vlaneseq
    %v204 = vshrl.u32 %v203, 7
    %v205 = vsub.s32 0, %v204
    %v206 = vrot.slane %v197, %v205
    %v207 = vmul.f32 %v172, %v206
    %v208 = vlaneseq
    %v209 = vshrl.u32 %v208, 7
    %v210 = vsub.s32 1, %v209
    %v211 = vrot.slane %v202, %v210
    %v212 = vadd.f32 %v207, %v211
    %v213 = vmax.f32 %v212, 0.0
    %s214 = smul.u32 4, 16
    %s215 = smul.u32 %s214, 1
    %s216 = sshll.u32 %s215, 4
    %217 = dma.done [#allocation4], %s216
    %v218 = vpack.c.bf16 %v213, %v213
    %v219 = vld [vmem:[#allocation2] sm:$0xff]
    %v220 = vld [vmem:[#allocation2 + $0x8] sm:$0xff]
    %v221 = vld [vmem:[#allocation2 + $0x10] sm:$0xff]
    %v222 = vld [vmem:[#allocation2 + $0x18] sm:$0xff]
    %v223 = vld [vmem:[#allocation2 + $0x20] sm:$0xff]
    %v224 = vld [vmem:[#allocation2 + $0x28] sm:$0xff]
    %v225 = vld [vmem:[#allocation2 + $0x30] sm:$0xff]
    %v226 = vld [vmem:[#allocation2 + $0x38] sm:$0xff]
    %227 = vmatprep.subr.bf16.mxu0 0
    %228 = vmatpush1.bf16.msra.mxu0 %v219
    %229 = vmatprep.subr.bf16.mxu0 0
    %230 = vmatpush1.bf16.msra.mxu0 %v220
    %231 = vmatprep.subr.bf16.mxu0 0
    %232 = vmatpush1.bf16.msra.mxu0 %v221
    %233 = vmatprep.subr.bf16.mxu0 0
    %234 = vmatpush1.bf16.msra.mxu0 %v222
    %235 = vmatprep.subr.bf16.mxu0 0
    %236 = vmatpush1.bf16.msra.mxu0 %v223
    %237 = vmatprep.subr.bf16.mxu0 0
    %238 = vmatpush1.bf16.msra.mxu0 %v224
    %239 = vmatprep.subr.bf16.mxu0 0
    %240 = vmatpush1.bf16.msra.mxu0 %v225
    %241 = vmatprep.subr.bf16.mxu0 0
    %242 = vmatpush1.bf16.msra.mxu0 %v226
    %243 = vmatprep.subr.bf16.mxu0 0
    %244 = vmatpush1.bf16.msra.mxu0 0
    %245 = vmatprep.subr.bf16.mxu0 0
    %246 = vmatpush1.bf16.msra.mxu0 0
    %247 = vmatprep.subr.bf16.mxu0 0
    %248 = vmatpush1.bf16.msra.mxu0 0
    %249 = vmatprep.subr.bf16.mxu0 0
    %250 = vmatpush1.bf16.msra.mxu0 0
    %251 = vmatprep.subr.bf16.mxu0 0
    %252 = vmatpush1.bf16.msra.mxu0 0
    %253 = vmatprep.subr.bf16.mxu0 0
    %254 = vmatpush1.bf16.msra.mxu0 0
    %255 = vmatprep.subr.bf16.mxu0 0
    %256 = vmatpush1.bf16.msra.mxu0 0
    %257 = vmatprep.subr.bf16.mxu0 0
    %258 = vmatpush1.bf16.msra.mxu0 0
    %259 = vmatprep.mubr.bf16.mxu0 0
    %260 = vmatmul.mubr.bf16.gmra.mrb[0].mxu0 %v218
    %v261 = vpop.f32.mrb[0].mxu0
    %v262 = vadd.f32 0.0, %v261
    %v263 = vpop.f32.mrb[0].mxu0
    %v264 = vpop.f32.mrb[0].mxu0
    %v265 = vpop.f32.mrb[0].mxu0
    %266 = vdwg.mxu0
    %v267 = vmul.f32 %v262, %v262
    %v268 = vrot.slane %v262, 4
    %v269 = vadd.f32 %v262, %v268
    %v270 = vrot.slane %v269, 2
    %v271 = vadd.f32 %v269, %v270
    %v272 = vrot.slane %v271, 1
    %v273 = vadd.f32 %v271, %v272
    %v274 = vrot.slane %v267, 4
    %v275 = vadd.f32 %v267, %v274
    %v276 = vrot.slane %v275, 2
    %v277 = vadd.f32 %v275, %v276
    %v278 = vrot.slane %v277, 1
    %v279 = vadd.f32 %v277, %v278
    %v280 = vmul.f32 %v273, 0.125
    %v281 = vmul.f32 %v279, 0.125
    %v282 = vmul.f32 %v280, %v280
    %v283 = vsub.f32 %v281, %v282
    %v284 = vmax.f32 %v283, 0.0
    %v285 = vadd.f32 %v284, 1e-05
    %v286 = vrsqrt.pop %v285
    %v287 = vmul.f32 %v71, %v286
    %v288 = vmul.f32 %v280, %v287
    %v290 = vrot.slane %v288, 7
    %v292 = vsub.f32 %v71, %v290
    %v293 = vlaneseq
    %v294 = vshrl.u32 %v293, 7
    %v295 = vsub.s32 2, %v294
    %v296 = vrot.slane %v287, %v295
    %v297 = vmul.f32 %v262, %v296
    %v298 = vlaneseq
    %v299 = vshrl.u32 %v298, 7
    %v300 = vsub.s32 3, %v299
    %v301 = vrot.slane %v292, %v300
    %v302 = vadd.f32 %v297, %v301
    %v303 = vmax.f32 %v302, 0.0
    %s304 = sshll.u32 %s215, 4
    %305 = dma.done %s58, %s304
    %v306 = vpack.c.bf16 %v303, %v303
    %v307 = vld [vmem:[#allocation3] sm:$0xff]
    %v308 = vld [vmem:[#allocation3 + $0x8] sm:$0xff]
    %v309 = vld [vmem:[#allocation3 + $0x10] sm:$0xff]
    %v310 = vld [vmem:[#allocation3 + $0x18] sm:$0xff]
    %v311 = vld [vmem:[#allocation3 + $0x20] sm:$0xff]
    %v312 = vld [vmem:[#allocation3 + $0x28] sm:$0xff]
    %v313 = vld [vmem:[#allocation3 + $0x30] sm:$0xff]
    %v314 = vld [vmem:[#allocation3 + $0x38] sm:$0xff]
    %v315 = vld [vmem:[%s5] sm:$0x1]
    %v317 = vlaneseq
    %v318 = vshrl.u32 %v317, 7
    %v319 = vsub.s32 0, %v318
    %v320 = vrot.slane %v315, %v319
    %322 = vmatprep.subr.bf16.mxu0 0
    %323 = vmatpush1.bf16.msra.mxu0 %v307
    %324 = vmatprep.subr.bf16.mxu0 0
    %325 = vmatpush1.bf16.msra.mxu0 %v308
    %326 = vmatprep.subr.bf16.mxu0 0
    %327 = vmatpush1.bf16.msra.mxu0 %v309
    %328 = vmatprep.subr.bf16.mxu0 0
    %329 = vmatpush1.bf16.msra.mxu0 %v310
    %330 = vmatprep.subr.bf16.mxu0 0
    %331 = vmatpush1.bf16.msra.mxu0 %v311
    %332 = vmatprep.subr.bf16.mxu0 0
    %333 = vmatpush1.bf16.msra.mxu0 %v312
    %334 = vmatprep.subr.bf16.mxu0 0
    %335 = vmatpush1.bf16.msra.mxu0 %v313
    %336 = vmatprep.subr.bf16.mxu0 0
    %337 = vmatpush1.bf16.msra.mxu0 %v314
    %338 = vmatprep.subr.bf16.mxu0 0
    %339 = vmatpush1.bf16.msra.mxu0 0
    %340 = vmatprep.subr.bf16.mxu0 0
    %341 = vmatpush1.bf16.msra.mxu0 0
    %342 = vmatprep.subr.bf16.mxu0 0
    %343 = vmatpush1.bf16.msra.mxu0 0
    %344 = vmatprep.subr.bf16.mxu0 0
    %345 = vmatpush1.bf16.msra.mxu0 0
    %346 = vmatprep.subr.bf16.mxu0 0
    %347 = vmatpush1.bf16.msra.mxu0 0
    %348 = vmatprep.subr.bf16.mxu0 0
    %349 = vmatpush1.bf16.msra.mxu0 0
    %350 = vmatprep.subr.bf16.mxu0 0
    %351 = vmatpush1.bf16.msra.mxu0 0
    %352 = vmatprep.subr.bf16.mxu0 0
    %353 = vmatpush1.bf16.msra.mxu0 0
    %354 = vmatprep.mubr.bf16.mxu0 0
    %355 = vmatmul.mubr.bf16.gmra.mrb[0].mxu0 %v306
    %v356 = vpop.f32.mrb[0].mxu0
    %v357 = vadd.f32 %v320, %v356
    %v358 = vpop.f32.mrb[0].mxu0
    %v359 = vpop.f32.mrb[0].mxu0
    %v360 = vpop.f32.mrb[0].mxu0
    %361 = vdwg.mxu0
    %362 = vst [vmem:[#allocation10] sm:$0xff] %v357
    // Predicated region
    $region34: #{tpu_custom_call.1} parent=1 // pred_check
      _
    $region35: #{tpu_custom_call.1} parent=1 // pred_check_branch
      %364 = sbr.rel (0) target = $region37
    $region36: #{tpu_custom_call.1} parent=1 // pred_region
      %s366 = ssub.s32 128, 128
      %367 = vsyncadd [#allocation7], %s366
      %s369 = sshll.u32 [#allocation10], 4
      %s370 = int_to_ptr.vmem [resolvable:$true] %s369
      %372 = dma.vmem_to_hbm [thread:$0]  %s370, 128, %s6, [#allocation7]
    $region37: #{tpu_custom_call.1} parent=1 // pred_fallthru
      _
    // Predicated region
    $region38: #{tpu_custom_call.1} parent=1 // pred_check
      _
    $region39: #{tpu_custom_call.1} parent=1 // pred_check_branch
      %374 = sbr.rel (0) target = $region41
    $region40: #{tpu_custom_call.1} parent=1 // pred_region
      %375 = dma.done [#allocation7], 128
    $region41: #{tpu_custom_call.1} parent=1 // pred_fallthru
      _
    %376 = vsyncpa [#allocation6], 1
    %377 = vsyncpa [#allocation9], 1
    %378 = vsyncpa [#allocation7], 1
  %379 = vsyncmov [#allocation4]
  %s380 = vpop.sfrf %379
  %p381 = scmp.eq.s32.totalorder %s380, 0
  %p382 = pneg %p381
  %384 = shalt.err (%p382)
  %s385 = scalar_lea.sflag [#allocation4], 1
  %386 = vsyncmov %s385
  %s387 = vpop.sfrf %386
  %p388 = scmp.eq.s32.totalorder %s387, 0
  %p389 = pneg %p388
  %391 = shalt.err (%p389)

</llo_original>
